<compile_context>
chip_gen: v5e
topology: v5e:2x2
jax: 0.10.0
libtpu: 0.0.40
codegen_flags: <defaults>
</compile_context>

<pallas_src>
import functools

import jax
import jax.numpy as jnp
from jax import lax
from jax.experimental import pallas as pl
from jax.experimental.pallas import tpu as pltpu


def _round_up(x, m):
    return (x + m - 1) // m * m


def _vmem_capacity_bytes():
    """Per-TensorCore VMEM capacity; conservative 64 MiB fallback (v7x-safe)."""
    try:
        info = pltpu.get_tpu_info()
        cap = getattr(info, "vmem_capacity_bytes", None)
        if cap:
            return int(cap)
    except Exception:
        pass
    return 64 * 1024 * 1024


def _wave_conv_kernel(x_ref, w_ref, b_ref, y_ref, *stat_refs, p_valid, tile,
                      emit_stats, needs_mask):
    """Haar-LL + ReLU + 1x1 conv (MXU) + ReLU (+ per-tile BN partial stats).

    x_ref: (4, 1, Cin, tile)  four 2x2 Haar taps, pixels on the lane axis
    w_ref: (Cout, Cin)        conv weight with the 0.5 Haar scale folded in
    b_ref: (Cout, 1)          conv bias (f32)
    y_ref: (1, Cout, tile)
    """
    # Haar LL subband (x0.5 folded into w): 3 dense VPU adds in f32, then ReLU.
    h = (x_ref[0, 0, :, :].astype(jnp.float32)
         + x_ref[1, 0, :, :].astype(jnp.float32)
         + x_ref[2, 0, :, :].astype(jnp.float32)
         + x_ref[3, 0, :, :].astype(jnp.float32))
    h = jnp.maximum(h, 0.0)

    # 1x1 conv: (Cout, Cin) @ (Cin, tile) on the MXU (bf16 operands by default).
    y = jnp.dot(w_ref[...], h.astype(w_ref.dtype),
                preferred_element_type=jnp.float32) + b_ref[...]
    y = jnp.maximum(y, 0.0)                          # (Cout, tile), f32
    y_ref[...] = y[None].astype(y_ref.dtype)

    if emit_stats:
        psum_ref, pssq_ref = stat_refs
        ys = y
        if needs_mask:
            col = pl.program_id(1) * tile + lax.broadcasted_iota(
                jnp.int32, (1, tile), 1)
            ys = jnp.where(col < p_valid, y, 0.0)
        # Per-tile partial sums in f32 (combined Chan-style in the wrapper).
        psum_ref[...] = jnp.sum(ys, axis=1, keepdims=True)[None, None]
        pssq_ref[...] = jnp.sum(ys * ys, axis=1, keepdims=True)[None, None]


def _bn_apply_kernel(y_ref, scale_ref, shift_ref, o_ref):
    """o = y * scale + shift  (scale/shift precomputed from mean/var/gamma/beta)."""
    y = y_ref[...].astype(jnp.float32)               # (1, Cout, tile2)
    o_ref[...] = (y * scale_ref[...] + shift_ref[...]).astype(o_ref.dtype)


def unet_wave_conv_block(x_nchw, w, b, gamma, beta, *, batch_norm=True,
                         eps=1e-5, tile_p=2048,
                         compute_dtype=jnp.bfloat16,
                         intermediate_dtype=jnp.bfloat16):
    """Forward pass of UNetWaveConvBlock.  x_nchw: (N, Cin, H, W) float32 NCHW."""
    N, Cin, H, W = x_nchw.shape
    Cout = w.shape[0]
    Ho, Wo = H // 2, W // 2
    P_img = Ho * Wo
    P_total = N * P_img

    if not batch_norm:
        intermediate_dtype = jnp.float32             # y is the final output

    in_item = jnp.dtype(compute_dtype).itemsize
    y_item = jnp.dtype(intermediate_dtype).itemsize

    # ---- per-generation VMEM budgeting (v5e/v6e: 128 MiB, v7x: 64 MiB) ----
    vmem_limit = int(_vmem_capacity_bytes() * 3 // 4)
    stream_budget = max(vmem_limit // 2, 1 << 20)

    per_px1 = 2 * (4 * Cin * in_item + Cout * y_item)     # double-buffered blocks
    tile_cap = max(stream_budget // per_px1, 128)
    tile_target = min(int(tile_p), int(tile_cap))
    if tile_target >= P_img:
        tile, P_pad, T = P_img, P_img, 1                  # single tile, no padding
    else:
        tile = max(128, (tile_target // 128) * 128)       # lane-aligned tile
        P_pad = _round_up(P_img, tile)
        T = P_pad // tile
    needs_pad = P_pad != P_img

    # ---- glue: bf16 cast BEFORE the one combined space-to-depth transpose ----
    xc = x_nchw.astype(compute_dtype)
    xq = xc.reshape(N, Cin, Ho, 2, Wo, 2)
    xq = jnp.transpose(xq, (3, 5, 0, 1, 2, 4)).reshape(4, N, Cin, P_img)
    if needs_pad:
        xq = jnp.pad(xq, ((0, 0), (0, 0), (0, 0), (0, P_pad - P_img)))

    # Fold the 0.5 Haar scale into the conv weights (ReLU commutes with +scale).
    w2 = (0.5 * w.reshape(Cout, Cin)).astype(compute_dtype)      # (Cout, Cin)
    b2 = b.reshape(Cout, 1).astype(jnp.float32)

    emit_stats = bool(batch_norm)
    kern = functools.partial(_wave_conv_kernel, p_valid=P_img, tile=tile,
                             emit_stats=emit_stats,
                             needs_mask=needs_pad and emit_stats)

    flops1 = int(N * P_pad * (4 * Cin + 2 * Cin * Cout + 4 * Cout))
    bytes1 = int(4 * N * P_pad * Cin * in_item + Cin * Cout * in_item
                 + Cout * 4 + N * P_pad * Cout * y_item
                 + (2 * N * T * Cout * 4 if emit_stats else 0))

    y_shape = jax.ShapeDtypeStruct((N, Cout, P_pad), intermediate_dtype)
    y_spec = pl.BlockSpec((1, Cout, tile), lambda n, t: (n, 0, t))
    if emit_stats:
        stat_shape = jax.ShapeDtypeStruct((N, T, Cout, 1), jnp.float32)
        stat_spec = pl.BlockSpec((1, 1, Cout, 1), lambda n, t: (n, t, 0, 0))
        out_shape = (y_shape, stat_shape, stat_shape)
        out_specs = (y_spec, stat_spec, stat_spec)
    else:
        out_shape = y_shape
        out_specs = y_spec

    cparams = pltpu.CompilerParams(
        dimension_semantics=("parallel", "parallel"),
        vmem_limit_bytes=vmem_limit)

    res = pl.pallas_call(
        kern,
        out_shape=out_shape,
        grid_spec=pltpu.PrefetchScalarGridSpec(
            num_scalar_prefetch=0,
            grid=(N, T),
            in_specs=[pl.BlockSpec((4, 1, Cin, tile), lambda n, t: (0, n, 0, t)),
                      pl.BlockSpec((Cout, Cin), lambda n, t: (0, 0)),
                      pl.BlockSpec((Cout, 1), lambda n, t: (0, 0))],
            out_specs=out_specs),
        compiler_params=cparams,
        cost_estimate=pl.CostEstimate(flops=flops1, transcendentals=0,
                                      bytes_accessed=bytes1),
    )(xq, w2, b2)

    if not batch_norm:
        out = res.astype(jnp.float32)
        if needs_pad:
            out = out[:, :, :P_img]
        return out.reshape(N, Cout, Ho, Wo)          # already NCHW: no transpose

    y, psum, pssq = res

    # ---- Chan-style per-tile (count, mean, M2) combine (cancellation-safe) ----
    cnt = jnp.clip(P_img - jnp.arange(T) * tile, 0, tile).astype(jnp.float32)
    cnt = cnt.reshape(1, T, 1, 1)                                # (1,T,1,1)
    mean_i = psum / cnt                                          # (N,T,Cout,1)
    m2_i = pssq - cnt * mean_i * mean_i
    mean = jnp.sum(psum, axis=(0, 1)) / P_total                  # (Cout,1)
    m2 = (jnp.sum(m2_i, axis=(0, 1))
          + jnp.sum(cnt * (mean_i - mean) ** 2, axis=(0, 1)))
    var = m2 / P_total                                           # biased (training)
    scale = gamma.reshape(Cout, 1).astype(jnp.float32) * lax.rsqrt(var + eps)
    shift = beta.reshape(Cout, 1).astype(jnp.float32) - mean * scale

    # ---- BN apply with its own (larger) streaming tile ----
    per_px2 = 2 * Cout * (y_item + 4)
    tile2_cap = max(stream_budget // per_px2, tile)
    tile2, T2 = tile, T
    for k in (8, 4, 2):
        if T % k == 0 and tile * k <= tile2_cap:
            tile2, T2 = tile * k, T // k
            break

    out_dtype = jnp.float32
    alias = ({0: 0} if jnp.dtype(intermediate_dtype) == jnp.dtype(out_dtype)
             else {})
    flops2 = int(2 * N * P_pad * Cout)
    bytes2 = int(N * P_pad * Cout * (y_item + 4) + 2 * Cout * 4)

    out = pl.pallas_call(
        _bn_apply_kernel,
        out_shape=jax.ShapeDtypeStruct((N, Cout, P_pad), out_dtype),
        grid_spec=pltpu.PrefetchScalarGridSpec(
            num_scalar_prefetch=0,
            grid=(N, T2),
            in_specs=[pl.BlockSpec((1, Cout, tile2), lambda n, t: (n, 0, t)),
                      pl.BlockSpec((Cout, 1), lambda n, t: (0, 0)),
                      pl.BlockSpec((Cout, 1), lambda n, t: (0, 0))],
            out_specs=pl.BlockSpec((1, Cout, tile2), lambda n, t: (n, 0, t))),
        compiler_params=cparams,
        cost_estimate=pl.CostEstimate(flops=flops2, transcendentals=0,
                                      bytes_accessed=bytes2),
        input_output_aliases=alias,
    )(y, scale, shift)

    if needs_pad:
        out = out[:, :, :P_img]
    return out.reshape(N, Cout, Ho, Wo)              # already NCHW: no transpose


def reference(x, w, b, gamma, beta, batch_norm=True, eps=1e-5):
    """Pure-JAX reference matching the PyTorch module semantics (NCHW)."""
    N, C, H, W = x.shape
    ll = 0.5 * (x[:, :, 0::2, 0::2] + x[:, :, 0::2, 1::2] +
                x[:, :, 1::2, 0::2] + x[:, :, 1::2, 1::2])   # haar LL
    h = jnp.maximum(ll, 0.0)
    y = jnp.einsum('nchw,oc->nohw', h, w.reshape(w.shape[0], C)) \
        + b.reshape(1, -1, 1, 1)
    y = jnp.maximum(y, 0.0)
    if batch_norm:
        mean = y.mean(axis=(0, 2, 3), keepdims=True)
        var = y.var(axis=(0, 2, 3), keepdims=True)           # biased
        y = (y - mean) / jnp.sqrt(var + eps) * gamma.reshape(1, -1, 1, 1) \
            + beta.reshape(1, -1, 1, 1)
    return y


if __name__ == "__main__":
    key = jax.random.PRNGKey(0)
    k1, k2, k3 = jax.random.split(key, 3)

    N, Cin, H, W = 2, 4, 16, 16
    Cout = 8

    x = jax.random.normal(k1, (N, Cin, H, W), dtype=jnp.float32)
    # Conv2d 1x1: (out, in, 1, 1) weight + bias; BatchNorm2d default affine init.
    w = 0.5 * jax.random.normal(k2, (Cout, Cin, 1, 1), dtype=jnp.float32)
    b = 0.1 * jax.random.normal(k3, (Cout,), dtype=jnp.float32)
    gamma = jnp.ones((Cout,), jnp.float32)
    beta = jnp.zeros((Cout,), jnp.float32)

    ref = reference(x, w, b, gamma, beta, batch_norm=True)

    # --- f32 compute path: tight check against the f32 reference ---
    @jax.jit
    def fwd_f32(x, w, b, g, bt):
        return unet_wave_conv_block(x, w, b, g, bt, batch_norm=True,
                                    compute_dtype=jnp.float32,
                                    intermediate_dtype=jnp.float32)

    out_f32 = jax.block_until_ready(fwd_f32(x, w, b, gamma, beta))
    assert out_f32.shape == (N, Cout, H // 2, W // 2)
    assert jnp.allclose(out_f32, ref, rtol=1e-4, atol=1e-4), \
        float(jnp.max(jnp.abs(out_f32 - ref)))

    # --- default bf16 streaming path (sanity check at bf16 tolerance) ---
    @jax.jit
    def fwd_bf16(x, w, b, g, bt):
        return unet_wave_conv_block(x, w, b, g, bt, batch_norm=True)

    out_bf16 = jax.block_until_ready(fwd_bf16(x, w, b, gamma, beta))
    assert jnp.allclose(out_bf16, ref, rtol=1e-1, atol=1e-1), \
        float(jnp.max(jnp.abs(out_bf16 - ref)))

    # --- multi-tile + padding + masked / Chan-combined BN statistics ---
    N2, Cin2, H2, W2, Cout2 = 2, 8, 40, 40, 16     # P_img=400 -> tile=128, T=4
    xb = jax.random.normal(k1, (N2, Cin2, H2, W2), dtype=jnp.float32)
    wb = 0.5 * jax.random.normal(k2, (Cout2, Cin2, 1, 1), dtype=jnp.float32)
    bb = 0.1 * jax.random.normal(k3, (Cout2,), dtype=jnp.float32)
    gb = jnp.ones((Cout2,), jnp.float32)
    bt2 = jnp.zeros((Cout2,), jnp.float32)
    ref_pad = reference(xb, wb, bb, gb, bt2, batch_norm=True)

    @jax.jit
    def fwd_pad(x, w, b, g, bt):
        return unet_wave_conv_block(x, w, b, g, bt, batch_norm=True,
                                    tile_p=128,
                                    compute_dtype=jnp.float32,
                                    intermediate_dtype=jnp.float32)

    out_pad = jax.block_until_ready(fwd_pad(xb, wb, bb, gb, bt2))
    assert out_pad.shape == (N2, Cout2, H2 // 2, W2 // 2)
    assert jnp.allclose(out_pad, ref_pad, rtol=1e-4, atol=1e-4), \
        float(jnp.max(jnp.abs(out_pad - ref_pad)))

    # --- batch_norm=False path (no stats outputs at all) ---
    @jax.jit
    def fwd_nobn(x, w, b, g, bt):
        return unet_wave_conv_block(x, w, b, g, bt, batch_norm=False,
                                    compute_dtype=jnp.float32)

    ref_nobn = reference(x, w, b, gamma, beta, batch_norm=False)
    out_nobn = jax.block_until_ready(fwd_nobn(x, w, b, gamma, beta))
    assert jnp.allclose(out_nobn, ref_nobn, rtol=1e-4, atol=1e-4), \
        float(jnp.max(jnp.abs(out_nobn - ref_nobn)))

    print("KERNEL_OK")
</pallas_src>

<mosaic_0001>
module attributes {stable_mosaic.version = 11 : i64} {
  func.func @_wave_conv_kernel(%arg0: i32, %arg1: i32, %arg2: memref<4x1x4x64xf32, #tpu.memory_space<vmem>>, %arg3: memref<8x4xf32, #tpu.memory_space<vmem>>, %arg4: memref<8x1xf32, #tpu.memory_space<vmem>>, %arg5: memref<1x8x64xf32, #tpu.memory_space<vmem>>, %arg6: memref<1x1x8x1xf32, #tpu.memory_space<vmem>>, %arg7: memref<1x1x8x1xf32, #tpu.memory_space<vmem>>) attributes {dimension_semantics = [#tpu.dimension_semantics<parallel>, #tpu.dimension_semantics<parallel>], iteration_bounds = array<i64: 2, 1>, scalar_prefetch = 0 : i64, scratch_operands = 0 : i64, tpu.core_type = #tpu.core_type<tc>, window_params = [{transform_indices = @transform_0, window_bounds = array<i64: 4, 1, 4, 64>}, {pipeline_mode = #tpu.pipeline_mode<synchronous>, transform_indices = @transform_1, window_bounds = array<i64: 8, 4>}, {pipeline_mode = #tpu.pipeline_mode<synchronous>, transform_indices = @transform_2, window_bounds = array<i64: 8, 1>}, {transform_indices = @transform_3, window_bounds = array<i64: 1, 8, 64>}, {transform_indices = @transform_4, window_bounds = array<i64: 1, 1, 8, 1>}, {transform_indices = @transform_5, window_bounds = array<i64: 1, 1, 8, 1>}]} {
    %c0 = arith.constant 0 : index
    %c0_0 = arith.constant 0 : index
    %c0_1 = arith.constant 0 : index
    %c0_2 = arith.constant 0 : index
    %0 = vector.load %arg2[%c0, %c0_0, %c0_1, %c0_2] : memref<4x1x4x64xf32, #tpu.memory_space<vmem>>, vector<1x1x4x64xf32>
    %1 = vector.shape_cast %0 : vector<1x1x4x64xf32> to vector<4x64xf32>
    %c1 = arith.constant 1 : index
    %c0_3 = arith.constant 0 : index
    %c0_4 = arith.constant 0 : index
    %c0_5 = arith.constant 0 : index
    %2 = vector.load %arg2[%c1, %c0_3, %c0_4, %c0_5] : memref<4x1x4x64xf32, #tpu.memory_space<vmem>>, vector<1x1x4x64xf32>
    %3 = vector.shape_cast %2 : vector<1x1x4x64xf32> to vector<4x64xf32>
    %4 = arith.addf %1, %3 : vector<4x64xf32>
    %c2 = arith.constant 2 : index
    %c0_6 = arith.constant 0 : index
    %c0_7 = arith.constant 0 : index
    %c0_8 = arith.constant 0 : index
    %5 = vector.load %arg2[%c2, %c0_6, %c0_7, %c0_8] : memref<4x1x4x64xf32, #tpu.memory_space<vmem>>, vector<1x1x4x64xf32>
    %6 = vector.shape_cast %5 : vector<1x1x4x64xf32> to vector<4x64xf32>
    %7 = arith.addf %4, %6 : vector<4x64xf32>
    %c3 = arith.constant 3 : index
    %c0_9 = arith.constant 0 : index
    %c0_10 = arith.constant 0 : index
    %c0_11 = arith.constant 0 : index
    %8 = vector.load %arg2[%c3, %c0_9, %c0_10, %c0_11] : memref<4x1x4x64xf32, #tpu.memory_space<vmem>>, vector<1x1x4x64xf32>
    %9 = vector.shape_cast %8 : vector<1x1x4x64xf32> to vector<4x64xf32>
    %10 = arith.addf %7, %9 : vector<4x64xf32>
    %cst = arith.constant 0.000000e+00 : f32
    %11 = vector.broadcast %cst : f32 to vector<4x64xf32>
    %12 = arith.maximumf %10, %11 : vector<4x64xf32>
    %c0_12 = arith.constant 0 : index
    %c0_13 = arith.constant 0 : index
    %13 = vector.load %arg3[%c0_12, %c0_13] : memref<8x4xf32, #tpu.memory_space<vmem>>, vector<8x4xf32>
    %cst_14 = arith.constant dense<0.000000e+00> : vector<8x64xf32>
    %14 = tpu.matmul %13, %12, %cst_14 {dimension_numbers = #tpu.dot_dimension_numbers<[1], [0], [0], [1], [0, 0, 1, 1], [], []>} : vector<8x4xf32>, vector<4x64xf32>, vector<8x64xf32> -> vector<8x64xf32>
    %c0_15 = arith.constant 0 : index
    %c0_16 = arith.constant 0 : index
    %15 = vector.load %arg4[%c0_15, %c0_16] : memref<8x1xf32, #tpu.memory_space<vmem>>, vector<8x1xf32>
    %16 = vector.broadcast %15 : vector<8x1xf32> to vector<8x64xf32>
    %17 = arith.addf %14, %16 : vector<8x64xf32>
    %cst_17 = arith.constant 0.000000e+00 : f32
    %18 = vector.broadcast %cst_17 : f32 to vector<8x64xf32>
    %19 = arith.maximumf %17, %18 : vector<8x64xf32>
    %20 = vector.shape_cast %19 : vector<8x64xf32> to vector<1x8x64xf32>
    %c0_18 = arith.constant 0 : index
    %c0_19 = arith.constant 0 : index
    %c0_20 = arith.constant 0 : index
    %21 = vector.load %arg5[%c0_18, %c0_19, %c0_20] : memref<1x8x64xf32, #tpu.memory_space<vmem>>, vector<1x8x64xf32>
    tpu.vector_store %arg5[%c0_18, %c0_19, %c0_20], %20 {strides = array<i32>} : memref<1x8x64xf32, #tpu.memory_space<vmem>>, vector<1x8x64xf32>,
    %cst_21 = arith.constant dense<0.000000e+00> : vector<8xf32>
    %22 = vector.multi_reduction <add>, %19, %cst_21 [1] : vector<8x64xf32> to vector<8xf32>
    %23 = vector.shape_cast %22 : vector<8xf32> to vector<8x1xf32>
    %24 = vector.shape_cast %23 : vector<8x1xf32> to vector<1x1x8x1xf32>
    %c0_22 = arith.constant 0 : index
    %c0_23 = arith.constant 0 : index
    %c0_24 = arith.constant 0 : index
    %c0_25 = arith.constant 0 : index
    %25 = vector.load %arg6[%c0_22, %c0_23, %c0_24, %c0_25] : memref<1x1x8x1xf32, #tpu.memory_space<vmem>>, vector<1x1x8x1xf32>
    tpu.vector_store %arg6[%c0_22, %c0_23, %c0_24, %c0_25], %24 {strides = array<i32>} : memref<1x1x8x1xf32, #tpu.memory_space<vmem>>, vector<1x1x8x1xf32>,
    %26 = arith.mulf %19, %19 : vector<8x64xf32>
    %cst_26 = arith.constant dense<0.000000e+00> : vector<8xf32>
    %27 = vector.multi_reduction <add>, %26, %cst_26 [1] : vector<8x64xf32> to vector<8xf32>
    %28 = vector.shape_cast %27 : vector<8xf32> to vector<8x1xf32>
    %29 = vector.shape_cast %28 : vector<8x1xf32> to vector<1x1x8x1xf32>
    %c0_27 = arith.constant 0 : index
    %c0_28 = arith.constant 0 : index
    %c0_29 = arith.constant 0 : index
    %c0_30 = arith.constant 0 : index
    %30 = vector.load %arg7[%c0_27, %c0_28, %c0_29, %c0_30] : memref<1x1x8x1xf32, #tpu.memory_space<vmem>>, vector<1x1x8x1xf32>
    tpu.vector_store %arg7[%c0_27, %c0_28, %c0_29, %c0_30], %29 {strides = array<i32>} : memref<1x1x8x1xf32, #tpu.memory_space<vmem>>, vector<1x1x8x1xf32>,
    return
  }
  func.func @transform_0(%arg0: i32, %arg1: i32) -> (i32, i32, i32, i32) {
    %c0_i32 = arith.constant 0 : i32
    %c0_i32_0 = arith.constant 0 : i32
    %c0_i32_1 = arith.constant 0 : i32
    return %c0_i32, %arg0, %c0_i32_0, %arg1 : i32, i32, i32, i32
  }
  func.func @transform_1(%arg0: i32, %arg1: i32) -> (i32, i32) {
    %c0_i32 = arith.constant 0 : i32
    %c0_i32_0 = arith.constant 0 : i32
    %c0_i32_1 = arith.constant 0 : i32
    return %c0_i32, %c0_i32_0 : i32, i32
  }
  func.func @transform_2(%arg0: i32, %arg1: i32) -> (i32, i32) {
    %c0_i32 = arith.constant 0 : i32
    %c0_i32_0 = arith.constant 0 : i32
    %c0_i32_1 = arith.constant 0 : i32
    return %c0_i32, %c0_i32_0 : i32, i32
  }
  func.func @transform_3(%arg0: i32, %arg1: i32) -> (i32, i32, i32) {
    %c0_i32 = arith.constant 0 : i32
    %c0_i32_0 = arith.constant 0 : i32
    return %arg0, %c0_i32, %arg1 : i32, i32, i32
  }
  func.func @transform_4(%arg0: i32, %arg1: i32) -> (i32, i32, i32, i32) {
    %c0_i32 = arith.constant 0 : i32
    %c0_i32_0 = arith.constant 0 : i32
    %c0_i32_1 = arith.constant 0 : i32
    return %arg0, %arg1, %c0_i32, %c0_i32_0 : i32, i32, i32, i32
  }
  func.func @transform_5(%arg0: i32, %arg1: i32) -> (i32, i32, i32, i32) {
    %c0_i32 = arith.constant 0 : i32
    %c0_i32_0 = arith.constant 0 : i32
    %c0_i32_1 = arith.constant 0 : i32
    return %arg0, %arg1, %c0_i32, %c0_i32_0 : i32, i32, i32, i32
  }
}

module attributes {stable_mosaic.version = 11 : i64} {
  func.func @_bn_apply_kernel(%arg0: i32, %arg1: i32, %arg2: memref<1x8x64xf32, #tpu.memory_space<vmem>>, %arg3: memref<8x1xf32, #tpu.memory_space<vmem>>, %arg4: memref<8x1xf32, #tpu.memory_space<vmem>>, %arg5: memref<1x8x64xf32, #tpu.memory_space<vmem>>) attributes {dimension_semantics = [#tpu.dimension_semantics<parallel>, #tpu.dimension_semantics<parallel>], iteration_bounds = array<i64: 2, 1>, scalar_prefetch = 0 : i64, scratch_operands = 0 : i64, tpu.core_type = #tpu.core_type<tc>, window_params = [{transform_indices = @transform_0, window_bounds = array<i64: 1, 8, 64>}, {pipeline_mode = #tpu.pipeline_mode<synchronous>, transform_indices = @transform_1, window_bounds = array<i64: 8, 1>}, {pipeline_mode = #tpu.pipeline_mode<synchronous>, transform_indices = @transform_2, window_bounds = array<i64: 8, 1>}, {transform_indices = @transform_3, window_bounds = array<i64: 1, 8, 64>}]} {
    %c0 = arith.constant 0 : index
    %c0_0 = arith.constant 0 : index
    %c0_1 = arith.constant 0 : index
    %0 = vector.load %arg2[%c0, %c0_0, %c0_1] : memref<1x8x64xf32, #tpu.memory_space<vmem>>, vector<1x8x64xf32>
    %c0_2 = arith.constant 0 : index
    %c0_3 = arith.constant 0 : index
    %1 = vector.load %arg3[%c0_2, %c0_3] : memref<8x1xf32, #tpu.memory_space<vmem>>, vector<8x1xf32>
    %2 = vector.shape_cast %1 : vector<8x1xf32> to vector<1x8x1xf32>
    %3 = vector.broadcast %2 : vector<1x8x1xf32> to vector<1x8x64xf32>
    %4 = arith.mulf %0, %3 : vector<1x8x64xf32>
    %c0_4 = arith.constant 0 : index
    %c0_5 = arith.constant 0 : index
    %5 = vector.load %arg4[%c0_4, %c0_5] : memref<8x1xf32, #tpu.memory_space<vmem>>, vector<8x1xf32>
    %6 = vector.shape_cast %5 : vector<8x1xf32> to vector<1x8x1xf32>
    %7 = vector.broadcast %6 : vector<1x8x1xf32> to vector<1x8x64xf32>
    %8 = arith.addf %4, %7 : vector<1x8x64xf32>
    %c0_6 = arith.constant 0 : index
    %c0_7 = arith.constant 0 : index
    %c0_8 = arith.constant 0 : index
    %9 = vector.load %arg5[%c0_6, %c0_7, %c0_8] : memref<1x8x64xf32, #tpu.memory_space<vmem>>, vector<1x8x64xf32>
    tpu.vector_store %arg5[%c0_6, %c0_7, %c0_8], %8 {strides = array<i32>} : memref<1x8x64xf32, #tpu.memory_space<vmem>>, vector<1x8x64xf32>,
    return
  }
  func.func @transform_0(%arg0: i32, %arg1: i32) -> (i32, i32, i32) {
    %c0_i32 = arith.constant 0 : i32
    %c0_i32_0 = arith.constant 0 : i32
    return %arg0, %c0_i32, %arg1 : i32, i32, i32
  }
  func.func @transform_1(%arg0: i32, %arg1: i32) -> (i32, i32) {
    %c0_i32 = arith.constant 0 : i32
    %c0_i32_0 = arith.constant 0 : i32
    %c0_i32_1 = arith.constant 0 : i32
    return %c0_i32, %c0_i32_0 : i32, i32
  }
  func.func @transform_2(%arg0: i32, %arg1: i32) -> (i32, i32) {
    %c0_i32 = arith.constant 0 : i32
    %c0_i32_0 = arith.constant 0 : i32
    %c0_i32_1 = arith.constant 0 : i32
    return %c0_i32, %c0_i32_0 : i32, i32
  }
  func.func @transform_3(%arg0: i32, %arg1: i32) -> (i32, i32, i32) {
    %c0_i32 = arith.constant 0 : i32
    %c0_i32_0 = arith.constant 0 : i32
    return %arg0, %c0_i32, %arg1 : i32, i32, i32
  }
}

</mosaic_0001>

<llo_original>
// kernel: fwd_f32.2
$region0: #{fwd_f32.2}
  #allocation0 [shape = 'u32[]', space=smem, size = 0x4, offset = 0x4, fixed_abs, tag = 'smem constant byte address 0x4 - core index']
  #allocation1 [shape = 'u32[72,128]{1,0:T(1,128)}', space=vmem, size = 0x9000, scoped, tag = 'internal scratch']
  %s0 = inlined_call_operand.vmem [shape: f32[4,2,4,64], index: 0, kind: input, shape index: {}]
  %s1 = inlined_call_operand.vmem [shape: f32[8,4], index: 1, kind: input, shape index: {}]
  %s2 = inlined_call_operand.vmem [shape: f32[8,1], index: 2, kind: input, shape index: {}]
  %s3 = inlined_call_operand.vmem [shape: f32[2,8,64], index: 3, kind: output, shape index: {0}]
  %s4 = inlined_call_operand.vmem [shape: f32[2,1,8,1], index: 4, kind: output, shape index: {1}]
  %s5 = inlined_call_operand.vmem [shape: f32[2,1,8,1], index: 5, kind: output, shape index: {2}]
  %6 = xla_tuple %s3, %s4, %s5
  %s7 = sld [smem:[#allocation0]]
  $region102: #{fwd_f32.2} parent=0
    _
  %s9 = ssub.s32 1, %s7
  %s10 = scalar_select 0, %s9, %s7
  $region1: #{fwd_f32.2} parent=0
    #allocation2 [shape = 'u8[16384]{0}', space=vmem, size = 0x4000, scoped, tag = 'input window, operand 0']
    loop: start=0, step=1, limit=4
    $region2: #{fwd_f32.2} parent=1 // loop_pre_header
      _
    $region3: #{fwd_f32.2} parent=1 // loop_header
      %s12 = sphi 0, %s16
      %p13 = scmp.ge.s32.totalorder %s12, 4
      %s19 = sphi 0, %s31
      %s20 = sphi 0, %s27
      %s21 = sphi 0, %s19
      %s22 = sphi 0, %s20
      %s23 = sphi 0, %s21
      %s24 = sphi 0, %s22
      %s36 = sphi 0, %s38
      %s39 = sphi 0, %s36
      %s40 = sphi 0, %s39
      %s56 = sphi 0, %s40
      %s60 = sphi 0, %s60
      %s62 = sphi 0, %s60
      %s63 = sphi 0, %s62
      %s77 = sphi 0, %s63
      %s81 = sphi 0, %s81
      %s83 = sphi 0, %s81
      %s84 = sphi 0, %s83
      %s98 = sphi 0, %s84
      %s106 = sphi 0, %s108
      %s109 = sphi 0, %s106
      %s110 = sphi 0, %s109
      %s126 = sphi 0, %s110
      %s134 = sphi 0, %s136
      %s137 = sphi 0, %s134
      %s138 = sphi 0, %s137
      %s154 = sphi 0, %s138
      %s162 = sphi 0, %s164
      %s165 = sphi 0, %s162
      %s166 = sphi 0, %s165
      %s182 = sphi 0, %s166
    $region4: #{fwd_f32.2} parent=1 // loop_header_branch
      %15 = sbr.rel (%p13) target = $region8
    $region5: #{fwd_f32.2} parent=1 // loop_body
      %s17 = ssub.s32 %s12, 1
      %s18 = ssub.s32 %s12, 2
      %s25 = sadd.s32 1, %s20
      %p26 = scmp.ge.s32.totalorder %s25, 1
      %s27 = scalar_select %p26, 0, %s25
      %s28 = sadd.s32 1, %s19
      %s29 = scalar_select %p26, %s28, %s19
      %p30 = scmp.ge.s32.totalorder %s29, 2
      %s31 = scalar_select %p30, 0, %s29
      %s32 = ssub.s32 %s19, %s31
      %s33 = ssub.s32 %s20, %s27
      %s34 = sor.u32 %s32, %s33
      %p35 = scmp.eq.s32.totalorder %s34, 0
      %s37 = sadd.s32 %s36, 1
      %s38 = scalar_select %p35, %s36, %s37
      %p41 = pneg %p35
      %p42 = scmp.eq.s32.totalorder %s12, 1
      %p43 = por %p41, %p42
      %p44 = scmp.ne.s32.totalorder %s36, %s39
      %p45 = scmp.eq.s32.totalorder %s12, 0
      %p46 = por %p44, %p45
      %p47 = scmp.ne.s32.totalorder %s36, %s39
      %p48 = scmp.eq.s32.totalorder %s17, 1
      %p49 = por %p47, %p48
      %p50 = scmp.ne.s32.totalorder %s39, %s40
      %p51 = scmp.eq.s32.totalorder %s17, 0
      %p52 = por %p50, %p51
      %p53 = scmp.ne.s32.totalorder %s39, %s40
      %p54 = scmp.eq.s32.totalorder %s18, 1
      %p55 = por %p53, %p54
      %p57 = scmp.ne.s32.totalorder %s40, %s56
      %p58 = scmp.eq.s32.totalorder %s18, 0
      %p59 = por %p57, %p58
      %s61 = sadd.s32 %s60, 1
      %p64 = scmp.eq.s32.totalorder %s12, 1
      %p65 = scmp.ne.s32.totalorder %s60, %s62
      %p66 = scmp.eq.s32.totalorder %s12, 0
      %p67 = por %p65, %p66
      %p68 = scmp.ne.s32.totalorder %s60, %s62
      %p69 = scmp.eq.s32.totalorder %s17, 1
      %p70 = por %p68, %p69
      %p71 = scmp.ne.s32.totalorder %s62, %s63
      %p72 = scmp.eq.s32.totalorder %s17, 0
      %p73 = por %p71, %p72
      %p74 = scmp.ne.s32.totalorder %s62, %s63
      %p75 = scmp.eq.s32.totalorder %s18, 1
      %p76 = por %p74, %p75
      %p78 = scmp.ne.s32.totalorder %s63, %s77
      %p79 = scmp.eq.s32.totalorder %s18, 0
      %p80 = por %p78, %p79
      %s82 = sadd.s32 %s81, 1
      %p85 = scmp.eq.s32.totalorder %s12, 1
      %p86 = scmp.ne.s32.totalorder %s81, %s83
      %p87 = scmp.eq.s32.totalorder %s12, 0
      %p88 = por %p86, %p87
      %p89 = scmp.ne.s32.totalorder %s81, %s83
      %p90 = scmp.eq.s32.totalorder %s17, 1
      %p91 = por %p89, %p90
      %p92 = scmp.ne.s32.totalorder %s83, %s84
      %p93 = scmp.eq.s32.totalorder %s17, 0
      %p94 = por %p92, %p93
      %p95 = scmp.ne.s32.totalorder %s83, %s84
      %p96 = scmp.eq.s32.totalorder %s18, 1
      %p97 = por %p95, %p96
      %p99 = scmp.ne.s32.totalorder %s84, %s98
      %p100 = scmp.eq.s32.totalorder %s18, 0
      %p101 = por %p99, %p100
      %s102 = ssub.s32 %s19, %s31
      %s103 = ssub.s32 %s20, %s27
      %s104 = sor.u32 %s102, %s103
      %p105 = scmp.eq.s32.totalorder %s104, 0
      %s107 = sadd.s32 %s106, 1
      %s108 = scalar_select %p105, %s106, %s107
      %p111 = pneg %p105
      %p112 = scmp.eq.s32.totalorder %s12, 1
      %p113 = por %p111, %p112
      %p114 = scmp.ne.s32.totalorder %s106, %s109
      %p115 = scmp.eq.s32.totalorder %s12, 0
      %p116 = por %p114, %p115
      %p117 = scmp.ne.s32.totalorder %s106, %s109
      %p118 = scmp.eq.s32.totalorder %s17, 1
      %p119 = por %p117, %p118
      %p120 = scmp.ne.s32.totalorder %s109, %s110
      %p121 = scmp.eq.s32.totalorder %s17, 0
      %p122 = por %p120, %p121
      %p123 = scmp.ne.s32.totalorder %s109, %s110
      %p124 = scmp.eq.s32.totalorder %s18, 1
      %p125 = por %p123, %p124
      %p127 = scmp.ne.s32.totalorder %s110, %s126
      %p128 = scmp.eq.s32.totalorder %s18, 0
      %p129 = por %p127, %p128
      %s130 = ssub.s32 %s19, %s31
      %s131 = ssub.s32 %s20, %s27
      %s132 = sor.u32 %s130, %s131
      %p133 = scmp.eq.s32.totalorder %s132, 0
      %s135 = sadd.s32 %s134, 1
      %s136 = scalar_select %p133, %s134, %s135
      %p139 = pneg %p133
      %p140 = scmp.eq.s32.totalorder %s12, 1
      %p141 = por %p139, %p140
      %p142 = scmp.ne.s32.totalorder %s134, %s137
      %p143 = scmp.eq.s32.totalorder %s12, 0
      %p144 = por %p142, %p143
      %p145 = scmp.ne.s32.totalorder %s134, %s137
      %p146 = scmp.eq.s32.totalorder %s17, 1
      %p147 = por %p145, %p146
      %p148 = scmp.ne.s32.totalorder %s137, %s138
      %p149 = scmp.eq.s32.totalorder %s17, 0
      %p150 = por %p148, %p149
      %p151 = scmp.ne.s32.totalorder %s137, %s138
      %p152 = scmp.eq.s32.totalorder %s18, 1
      %p153 = por %p151, %p152
      %p155 = scmp.ne.s32.totalorder %s138, %s154
      %p156 = scmp.eq.s32.totalorder %s18, 0
      %p157 = por %p155, %p156
      %s158 = ssub.s32 %s19, %s31
      %s159 = ssub.s32 %s20, %s27
      %s160 = sor.u32 %s158, %s159
      %p161 = scmp.eq.s32.totalorder %s160, 0
      %s163 = sadd.s32 %s162, 1
      %s164 = scalar_select %p161, %s162, %s163
      %p167 = pneg %p161
      %p168 = scmp.eq.s32.totalorder %s12, 1
      %p169 = por %p167, %p168
      %p170 = scmp.ne.s32.totalorder %s162, %s165
      %p171 = scmp.eq.s32.totalorder %s12, 0
      %p172 = por %p170, %p171
      %p173 = scmp.ne.s32.totalorder %s162, %s165
      %p174 = scmp.eq.s32.totalorder %s17, 1
      %p175 = por %p173, %p174
      %p176 = scmp.ne.s32.totalorder %s165, %s166
      %p177 = scmp.eq.s32.totalorder %s17, 0
      %p178 = por %p176, %p177
      %p179 = scmp.ne.s32.totalorder %s165, %s166
      %p180 = scmp.eq.s32.totalorder %s18, 1
      %p181 = por %p179, %p180
      %p183 = scmp.ne.s32.totalorder %s166, %s182
      %p184 = scmp.eq.s32.totalorder %s18, 0
      %p185 = por %p183, %p184
      %p186 = scmp.le.s32.totalorder 1, %s12
      %p187 = scmp.lt.s32.totalorder %s12, 3
      %p188 = pnand %p186, %p187
      %p189 = pneg %p188
      // Predicated region
      $region9: #{fwd_f32.2} parent=5 // pred_check
        _
      $region10: #{fwd_f32.2} parent=5 // pred_check_branch
        %191 = sbr.rel (%p188) target = $region12
      $region11: #{fwd_f32.2} parent=5 // pred_region
        %s192 = ssub.s32 %s12, 1
        // Predicated region
        $region13: #{fwd_f32.2} parent=11 // pred_check
          %p193 = pneg %p73
        $region14: #{fwd_f32.2} parent=11 // pred_check_branch
          %195 = sbr.rel (%p193) target = $region16
        $region15: #{fwd_f32.2} parent=11 // pred_region
          _
        $region16: #{fwd_f32.2} parent=11 // pred_fallthru
          _
        // Predicated region
        $region17: #{fwd_f32.2} parent=11 // pred_check
          %p196 = pneg %p94
        $region18: #{fwd_f32.2} parent=11 // pred_check_branch
          %198 = sbr.rel (%p196) target = $region20
        $region19: #{fwd_f32.2} parent=11 // pred_region
          _
        $region20: #{fwd_f32.2} parent=11 // pred_fallthru
          _
      $region12: #{fwd_f32.2} parent=5 // pred_fallthru
        _
      %p199 = scmp.lt.s32.totalorder %s12, 2
      // Predicated region
      $region21: #{fwd_f32.2} parent=5 // pred_check
        %p200 = pneg %p199
      $region22: #{fwd_f32.2} parent=5 // pred_check_branch
        %202 = sbr.rel (%p200) target = $region24
      $region23: #{fwd_f32.2} parent=5 // pred_region
        // Predicated region
        $region25: #{fwd_f32.2} parent=23 // pred_check
          %p203 = pneg %p46
        $region26: #{fwd_f32.2} parent=23 // pred_check_branch
          %205 = sbr.rel (%p203) target = $region28
        $region27: #{fwd_f32.2} parent=23 // pred_region
          %s206 = sand.u32 %s36, 1
          %s207 = sand.u32 %s36, 1
          %s208 = smul.addr %s207, 16
          %s209 = scalar_lea.vmem [#allocation2], %s208
          %s210 = sadd.s32 %s20, %s19
          %s211 = smul.addr %s210, 4
          %s212 = scalar_lea.vmem %s0, %s211
          // Predicated region
          $region29: #{fwd_f32.2} parent=27 // pred_check
            _
          $region30: #{fwd_f32.2} parent=27 // pred_check_branch
            %214 = sbr.rel (0) target = $region32
          $region31: #{fwd_f32.2} parent=27 // pred_region
            // Predicated region
            $region33: #{fwd_f32.2} parent=31 // pred_check
              _
            $region34: #{fwd_f32.2} parent=31 // pred_check_branch
              %216 = sbr.rel target = $region36
            $region35: #{fwd_f32.2} parent=31 // pred_region
              // Predicated region
              $region48: #{fwd_f32.2} parent=35 // pred_check
                _
              $region49: #{fwd_f32.2} parent=35 // pred_check_branch
                %238 = sbr.rel (0) target = $region51
              $region50: #{fwd_f32.2} parent=35 // pred_region
                loop: start=0, step=1, limit=1
                $region52: #{fwd_f32.2} parent=50 // loop_pre_header
                  _
                $region53: #{fwd_f32.2} parent=50 // loop_header
                  %s240 = sphi 0, %s244
                  %p241 = scmp.ge.s32.totalorder %s240, 1
                  %s245 = sphi %s212, %s212
                  %s246 = sphi %s209, %s209
                $region54: #{fwd_f32.2} parent=50 // loop_header_branch
                  %243 = sbr.rel (%p241) target = $region58
                $region55: #{fwd_f32.2} parent=50 // loop_body
                  _
                $region56: #{fwd_f32.2} parent=50 // loop_footer
                  %s244 = sadd.s32 1, %s240
                $region57: #{fwd_f32.2} parent=50 // loop_footer_branch
                  %239 = sbr.rel target = $region53
                $region58: #{fwd_f32.2} parent=50 // loop_exit
                  _
                %s248 = ssub.s32 16, 1
                loop: start=0, step=1, limit=1
                $region59: #{fwd_f32.2} parent=50 // loop_pre_header
                  _
                $region60: #{fwd_f32.2} parent=50 // loop_header
                  %s250 = sphi 0, %s254
                  %p251 = scmp.ge.s32.totalorder %s250, 1
                  %s255 = sphi %s212, %s212
                  %s256 = sphi %s209, %s209
                $region61: #{fwd_f32.2} parent=50 // loop_header_branch
                  %253 = sbr.rel (%p251) target = $region65
                $region62: #{fwd_f32.2} parent=50 // loop_body
                  %v257 = vld [vmem:[%s255] sm:%s248]
                  %258 = vst [vmem:[%s256] sm:%s248] %v257
                  %v259 = vld [vmem:[%s255 + $0x8] sm:%s248]
                  %260 = vst [vmem:[%s256 + $0x4] sm:%s248] %v259
                  %v261 = vld [vmem:[%s255 + $0x10] sm:%s248]
                  %262 = vst [vmem:[%s256 + $0x8] sm:%s248] %v261
                  %v263 = vld [vmem:[%s255 + $0x18] sm:%s248]
                  %264 = vst [vmem:[%s256 + $0xc] sm:%s248] %v263
                $region63: #{fwd_f32.2} parent=50 // loop_footer
                  %s254 = sadd.s32 1, %s250
                $region64: #{fwd_f32.2} parent=50 // loop_footer_branch
                  %249 = sbr.rel target = $region60
                $region65: #{fwd_f32.2} parent=50 // loop_exit
                  _
              $region51: #{fwd_f32.2} parent=35 // pred_fallthru
                _
            $region36: #{fwd_f32.2} parent=31 // pred_fallthru
              _
            // Predicated region
            $region37: #{fwd_f32.2} parent=31 // pred_check
              _
            $region38: #{fwd_f32.2} parent=31 // pred_check_branch
              %218 = sbr.rel (0) target = $region40
            $region39: #{fwd_f32.2} parent=31 // pred_region
              %s220 = ssub.s32 16, 1
              loop: start=0, step=1, limit=1
              $region41: #{fwd_f32.2} parent=39 // loop_pre_header
                _
              $region42: #{fwd_f32.2} parent=39 // loop_header
                %s222 = sphi 0, %s226
                %p223 = scmp.ge.s32.totalorder %s222, 1
                %s227 = sphi %s212, %s212
                %s228 = sphi %s209, %s209
              $region43: #{fwd_f32.2} parent=39 // loop_header_branch
                %225 = sbr.rel (%p223) target = $region47
              $region44: #{fwd_f32.2} parent=39 // loop_body
                %v229 = vld [vmem:[%s227] sm:%s220]
                %230 = vst [vmem:[%s228] sm:%s220] %v229
                %v231 = vld [vmem:[%s227 + $0x8] sm:%s220]
                %232 = vst [vmem:[%s228 + $0x4] sm:%s220] %v231
                %v233 = vld [vmem:[%s227 + $0x10] sm:%s220]
                %234 = vst [vmem:[%s228 + $0x8] sm:%s220] %v233
                %v235 = vld [vmem:[%s227 + $0x18] sm:%s220]
                %236 = vst [vmem:[%s228 + $0xc] sm:%s220] %v235
              $region45: #{fwd_f32.2} parent=39 // loop_footer
                %s226 = sadd.s32 1, %s222
              $region46: #{fwd_f32.2} parent=39 // loop_footer_branch
                %221 = sbr.rel target = $region42
              $region47: #{fwd_f32.2} parent=39 // loop_exit
                _
            $region40: #{fwd_f32.2} parent=31 // pred_fallthru
              _
          $region32: #{fwd_f32.2} parent=27 // pred_fallthru
            _
          %265 = vnop
        $region28: #{fwd_f32.2} parent=23 // pred_fallthru
          _
      $region24: #{fwd_f32.2} parent=5 // pred_fallthru
        _
      %p266 = scmp.le.s32.totalorder 1, %s12
      %p267 = scmp.lt.s32.totalorder %s12, 3
      %p268 = pnand %p266, %p267
      %p269 = pneg %p268
      // Predicated region
      $region66: #{fwd_f32.2} parent=5 // pred_check
        _
      $region67: #{fwd_f32.2} parent=5 // pred_check_branch
        %271 = sbr.rel (%p268) target = $region69
      $region68: #{fwd_f32.2} parent=5 // pred_region
        %s272 = ssub.s32 %s12, 1
        %s273 = sand.u32 %s39, 1
        %s274 = sand.u32 %s39, 1
        %s275 = smul.addr %s274, 16
        %s276 = scalar_lea.vmem [#allocation2], %s275
        // Predicated region
        $region70: #{fwd_f32.2} parent=68 // pred_check
          %p277 = pneg %p52
        $region71: #{fwd_f32.2} parent=68 // pred_check_branch
          %279 = sbr.rel (%p277) target = $region73
        $region72: #{fwd_f32.2} parent=68 // pred_region
          _
        $region73: #{fwd_f32.2} parent=68 // pred_fallthru
          _
        %s280 = sand.u32 %s39, 1
        %s281 = sand.u32 %s39, 1
        %s282 = smul.addr %s281, 16
        %s283 = scalar_lea.vmem [#allocation2], %s282
        %p284 = pneg %p52
        %p285 = pneg %p49
        %p286 = pneg %p73
        %p287 = pneg %p70
        %p288 = pneg %p94
        %p289 = pneg %p91
        %p290 = pneg %p122
        %p291 = pneg %p119
        %p292 = scmp.lt.s32.totalorder %s21, 1
        %s293 = scalar_select %p292, %s21, 1
        %p294 = scmp.lt.s32.totalorder %s22, 0
        %s295 = scalar_select %p294, %s22, 0
        %s296 = sadd.s32 %s295, %s293
        %s297 = smul.addr %s296, 8
        %s298 = scalar_lea.vmem %s3, %s297
        %p299 = pneg %p150
        %p300 = pneg %p147
        %p301 = scmp.lt.s32.totalorder %s21, 1
        %s302 = scalar_select %p301, %s21, 1
        %p303 = scmp.lt.s32.totalorder %s22, 0
        %s304 = scalar_select %p303, %s22, 0
        %s305 = sadd.s32 %s304, %s302
        %s306 = smul.addr %s305, 8
        %s307 = scalar_lea.vmem %s4, %s306
        %p308 = pneg %p178
        %p309 = pneg %p175
        %p310 = scmp.lt.s32.totalorder %s21, 1
        %s311 = scalar_select %p310, %s21, 1
        %p312 = scmp.lt.s32.totalorder %s22, 0
        %s313 = scalar_select %p312, %s22, 0
        %s314 = sadd.s32 %s313, %s311
        %s315 = smul.addr %s314, 8
        %s316 = scalar_lea.vmem %s5, %s315
        %p317 = scmp.lt.s32.totalorder %s21, 1
        %s318 = scalar_select %p317, %s21, 1
        %p319 = scmp.lt.s32.totalorder %s22, 0
        %s320 = scalar_select %p319, %s22, 0
        %s321 = sadd.s32 %s320, %s318
        %s322 = smul.addr %s321, 8
        %s323 = scalar_lea.vmem %s3, %s322
        %p324 = scmp.lt.s32.totalorder %s21, 1
        %s325 = scalar_select %p324, %s21, 1
        %p326 = scmp.lt.s32.totalorder %s22, 0
        %s327 = scalar_select %p326, %s22, 0
        %s328 = sadd.s32 %s327, %s325
        %s329 = smul.addr %s328, 8
        %s330 = scalar_lea.vmem %s4, %s329
        %p331 = scmp.lt.s32.totalorder %s21, 1
        %s332 = scalar_select %p331, %s21, 1
        %p333 = scmp.lt.s32.totalorder %s22, 0
        %s334 = scalar_select %p333, %s22, 0
        %s335 = sadd.s32 %s334, %s332
        %s336 = smul.addr %s335, 8
        %s337 = scalar_lea.vmem %s5, %s336
        %v338 = vld [vmem:[%s276] sm:$0xf]
        %s339 = scalar_lea.vmem %s276, 4 [#allocation2]
        %v340 = vld [vmem:[%s339] sm:$0xf]
        %v341 = vadd.f32 %v338, %v340
        %s342 = scalar_lea.vmem %s276, 8 [#allocation2]
        %v343 = vld [vmem:[%s342] sm:$0xf]
        %v344 = vadd.f32 %v341, %v343
        %s345 = scalar_lea.vmem %s276, 12 [#allocation2]
        %v346 = vld [vmem:[%s345] sm:$0xf]
        %v347 = vadd.f32 %v344, %v346
        %v348 = vmax.f32 %v347, 0.0
        %v349 = vld [vmem:[%s1] sm:$0xff]
        %v350 = vld [vmem:[%s2] sm:$0xff]
        %352 = vset.pattern.permute.xlu0 0
        %353 = vperm.xlu0 %352, %v350
        %v354 = vpop.permute.xlu0 %353
        %vm356 = vcmask 31744
        %v358 = vsel %vm356, %v349, 0
        %vm360 = vcmask 1043456
        %v362 = vsel %vm360, %v348, 0
        %364 = vmatpush.msra.mxu0 0.0
        %365 = vmatpush.msra.mxu0 0.0
        %366 = vmatpush.msra.mxu0 0.0
        %367 = vmatpush.msra.mxu0 0.0
        %368 = vmatpush.msra.mxu0 0.0
        %369 = vmatpush.msra.mxu0 0.0
        %370 = vmatpush.msra.mxu0 0.0
        %371 = vmatpush.msra.mxu0 0.0
        %372 = vmatpush.msra.mxu0 0.0
        %373 = vmatpush.msra.mxu0 0.0
        %374 = vmatpush.msra.mxu0 0.0
        %375 = vmatpush.msra.mxu0 0.0
        %376 = vmatpush.msra.mxu0 0.0
        %377 = vmatpush.msra.mxu0 0.0
        %378 = vmatpush.msra.mxu0 0.0
        %379 = vmatpush.msra.mxu0 %v362
        %380 = vmatmul.f32.gmra.mxu0 %v358
        %v381 = vpop.f32.mrf.mxu0
        %v382 = vadd.f32 %v354, %v381
        %383 = vdwg.mxu0
        %v384 = vmax.f32 %v382, 0.0
        %vm385 = vcmask 523264
        %386 = vst.msk [vmem:[%s323] sm:$0xff] %vm385, %v384
        %v387 = vsel %vm385, %v384, 0.0
        %388 = vadd.xlane.f32.xlu0 %v387
        %v389 = vpop.xlane.xlu0 %388
        %vm390 = vcmask 7168
        %391 = vst.msk [vmem:[%s330] sm:$0xff] %vm390, %v389
        %v392 = vmul.f32 %v384, %v384
        %v393 = vsel %vm385, %v392, 0.0
        %394 = vadd.xlane.f32.xlu0 %v393
        %v395 = vpop.xlane.xlu0 %394
        %396 = vst.msk [vmem:[%s337] sm:$0xff] %vm390, %v395
        %p397 = scmp.lt.s32.totalorder %s21, 1
        %s398 = scalar_select %p397, %s21, 1
        %p399 = scmp.lt.s32.totalorder %s22, 0
        %s400 = scalar_select %p399, %s22, 0
        %s401 = sadd.s32 %s400, %s398
        %s402 = smul.addr %s401, 8
        %s403 = scalar_lea.vmem %s3, %s402
        %p404 = scmp.lt.s32.totalorder %s21, 1
        %s405 = scalar_select %p404, %s21, 1
        %p406 = scmp.lt.s32.totalorder %s22, 0
        %s407 = scalar_select %p406, %s22, 0
        %s408 = sadd.s32 %s407, %s405
        %s409 = smul.addr %s408, 8
        %s410 = scalar_lea.vmem %s4, %s409
        %p411 = scmp.lt.s32.totalorder %s21, 1
        %s412 = scalar_select %p411, %s21, 1
        %p413 = scmp.lt.s32.totalorder %s22, 0
        %s414 = scalar_select %p413, %s22, 0
        %s415 = sadd.s32 %s414, %s412
        %s416 = smul.addr %s415, 8
        %s417 = scalar_lea.vmem %s5, %s416
        // Predicated region
        $region74: #{fwd_f32.2} parent=68 // pred_check
          %p418 = pneg %p119
        $region75: #{fwd_f32.2} parent=68 // pred_check_branch
          %420 = sbr.rel (%p418) target = $region77
        $region76: #{fwd_f32.2} parent=68 // pred_region
          _
        $region77: #{fwd_f32.2} parent=68 // pred_fallthru
          _
        // Predicated region
        $region78: #{fwd_f32.2} parent=68 // pred_check
          %p421 = pneg %p147
        $region79: #{fwd_f32.2} parent=68 // pred_check_branch
          %423 = sbr.rel (%p421) target = $region81
        $region80: #{fwd_f32.2} parent=68 // pred_region
          _
        $region81: #{fwd_f32.2} parent=68 // pred_fallthru
          _
        // Predicated region
        $region82: #{fwd_f32.2} parent=68 // pred_check
          %p424 = pneg %p175
        $region83: #{fwd_f32.2} parent=68 // pred_check_branch
          %426 = sbr.rel (%p424) target = $region85
        $region84: #{fwd_f32.2} parent=68 // pred_region
          _
        $region85: #{fwd_f32.2} parent=68 // pred_fallthru
          _
      $region69: #{fwd_f32.2} parent=5 // pred_fallthru
        _
      %p427 = scmp.le.s32.totalorder 2, %s12
      // Predicated region
      $region86: #{fwd_f32.2} parent=5 // pred_check
        %p428 = pneg %p427
      $region87: #{fwd_f32.2} parent=5 // pred_check_branch
        %430 = sbr.rel (%p428) target = $region89
      $region88: #{fwd_f32.2} parent=5 // pred_region
        %s431 = ssub.s32 %s12, 2
        // Predicated region
        $region90: #{fwd_f32.2} parent=88 // pred_check
          %p432 = pneg %p125
        $region91: #{fwd_f32.2} parent=88 // pred_check_branch
          %434 = sbr.rel (%p432) target = $region93
        $region92: #{fwd_f32.2} parent=88 // pred_region
          %p435 = scmp.lt.s32.totalorder %s23, 1
          %s436 = scalar_select %p435, %s23, 1
          %p437 = scmp.lt.s32.totalorder %s24, 0
          %s438 = scalar_select %p437, %s24, 0
          %s439 = sadd.s32 %s438, %s436
          %s440 = smul.addr %s439, 8
          %s441 = scalar_lea.vmem %s3, %s440
        $region93: #{fwd_f32.2} parent=88 // pred_fallthru
          _
        // Predicated region
        $region94: #{fwd_f32.2} parent=88 // pred_check
          %p442 = pneg %p153
        $region95: #{fwd_f32.2} parent=88 // pred_check_branch
          %444 = sbr.rel (%p442) target = $region97
        $region96: #{fwd_f32.2} parent=88 // pred_region
          %p445 = scmp.lt.s32.totalorder %s23, 1
          %s446 = scalar_select %p445, %s23, 1
          %p447 = scmp.lt.s32.totalorder %s24, 0
          %s448 = scalar_select %p447, %s24, 0
          %s449 = sadd.s32 %s448, %s446
          %s450 = smul.addr %s449, 8
          %s451 = scalar_lea.vmem %s4, %s450
        $region97: #{fwd_f32.2} parent=88 // pred_fallthru
          _
        // Predicated region
        $region98: #{fwd_f32.2} parent=88 // pred_check
          %p452 = pneg %p181
        $region99: #{fwd_f32.2} parent=88 // pred_check_branch
          %454 = sbr.rel (%p452) target = $region101
        $region100: #{fwd_f32.2} parent=88 // pred_region
          %p455 = scmp.lt.s32.totalorder %s23, 1
          %s456 = scalar_select %p455, %s23, 1
          %p457 = scmp.lt.s32.totalorder %s24, 0
          %s458 = scalar_select %p457, %s24, 0
          %s459 = sadd.s32 %s458, %s456
          %s460 = smul.addr %s459, 8
          %s461 = scalar_lea.vmem %s5, %s460
        $region101: #{fwd_f32.2} parent=88 // pred_fallthru
          _
      $region89: #{fwd_f32.2} parent=5 // pred_fallthru
        _
    $region6: #{fwd_f32.2} parent=1 // loop_footer
      %s16 = sadd.s32 1, %s12
    $region7: #{fwd_f32.2} parent=1 // loop_footer_branch
      %11 = sbr.rel target = $region3
    $region8: #{fwd_f32.2} parent=1 // loop_exit
      _

// kernel: fwd_f32.3
$region0: #{fwd_f32.3}
  #allocation0 [shape = 'u32[]', space=smem, size = 0x4, offset = 0x4, fixed_abs, tag = 'smem constant byte address 0x4 - core index']
  #allocation1 [shape = 'u32[72,128]{1,0:T(1,128)}', space=vmem, size = 0x9000, scoped, tag = 'internal scratch']
  %s0 = inlined_call_operand.vmem [shape: f32[2,8,64], index: 0, kind: input, shape index: {}, may-alias: {0,3}]
  %s1 = inlined_call_operand.vmem [shape: f32[8,1], index: 1, kind: input, shape index: {}]
  %s2 = inlined_call_operand.vmem [shape: f32[8,1], index: 2, kind: input, shape index: {}]
  %s3 = inlined_call_operand.vmem [shape: f32[2,8,64], index: 3, kind: output, shape index: {}, may-alias: {0,3}]
  %s4 = sld [smem:[#allocation0]]
  $region45: #{fwd_f32.3} parent=0
    _
  %s6 = ssub.s32 1, %s4
  %s7 = scalar_select 0, %s6, %s4
  loop: start=0, step=1, limit=4
  $region2: #{fwd_f32.3} parent=0 // loop_pre_header
    _
  $region3: #{fwd_f32.3} parent=0 // loop_header
    %s9 = sphi 0, %s13
    %p10 = scmp.ge.s32.totalorder %s9, 4
    %s16 = sphi 0, %s28
    %s17 = sphi 0, %s24
    %s18 = sphi 0, %s16
    %s19 = sphi 0, %s17
    %s20 = sphi 0, %s18
    %s21 = sphi 0, %s19
    %s33 = sphi 0, %s35
    %s36 = sphi 0, %s33
    %s37 = sphi 0, %s36
    %s53 = sphi 0, %s37
    %s57 = sphi 0, %s57
    %s59 = sphi 0, %s57
    %s60 = sphi 0, %s59
    %s74 = sphi 0, %s60
    %s78 = sphi 0, %s78
    %s80 = sphi 0, %s78
    %s81 = sphi 0, %s80
    %s95 = sphi 0, %s81
    %s103 = sphi 0, %s105
    %s106 = sphi 0, %s103
    %s107 = sphi 0, %s106
    %s123 = sphi 0, %s107
  $region4: #{fwd_f32.3} parent=0 // loop_header_branch
    %12 = sbr.rel (%p10) target = $region8
  $region5: #{fwd_f32.3} parent=0 // loop_body
    %s14 = ssub.s32 %s9, 1
    %s15 = ssub.s32 %s9, 2
    %s22 = sadd.s32 1, %s17
    %p23 = scmp.ge.s32.totalorder %s22, 1
    %s24 = scalar_select %p23, 0, %s22
    %s25 = sadd.s32 1, %s16
    %s26 = scalar_select %p23, %s25, %s16
    %p27 = scmp.ge.s32.totalorder %s26, 2
    %s28 = scalar_select %p27, 0, %s26
    %s29 = ssub.s32 %s16, %s28
    %s30 = ssub.s32 %s17, %s24
    %s31 = sor.u32 %s29, %s30
    %p32 = scmp.eq.s32.totalorder %s31, 0
    %s34 = sadd.s32 %s33, 1
    %s35 = scalar_select %p32, %s33, %s34
    %p38 = pneg %p32
    %p39 = scmp.eq.s32.totalorder %s9, 1
    %p40 = por %p38, %p39
    %p41 = scmp.ne.s32.totalorder %s33, %s36
    %p42 = scmp.eq.s32.totalorder %s9, 0
    %p43 = por %p41, %p42
    %p44 = scmp.ne.s32.totalorder %s33, %s36
    %p45 = scmp.eq.s32.totalorder %s14, 1
    %p46 = por %p44, %p45
    %p47 = scmp.ne.s32.totalorder %s36, %s37
    %p48 = scmp.eq.s32.totalorder %s14, 0
    %p49 = por %p47, %p48
    %p50 = scmp.ne.s32.totalorder %s36, %s37
    %p51 = scmp.eq.s32.totalorder %s15, 1
    %p52 = por %p50, %p51
    %p54 = scmp.ne.s32.totalorder %s37, %s53
    %p55 = scmp.eq.s32.totalorder %s15, 0
    %p56 = por %p54, %p55
    %s58 = sadd.s32 %s57, 1
    %p61 = scmp.eq.s32.totalorder %s9, 1
    %p62 = scmp.ne.s32.totalorder %s57, %s59
    %p63 = scmp.eq.s32.totalorder %s9, 0
    %p64 = por %p62, %p63
    %p65 = scmp.ne.s32.totalorder %s57, %s59
    %p66 = scmp.eq.s32.totalorder %s14, 1
    %p67 = por %p65, %p66
    %p68 = scmp.ne.s32.totalorder %s59, %s60
    %p69 = scmp.eq.s32.totalorder %s14, 0
    %p70 = por %p68, %p69
    %p71 = scmp.ne.s32.totalorder %s59, %s60
    %p72 = scmp.eq.s32.totalorder %s15, 1
    %p73 = por %p71, %p72
    %p75 = scmp.ne.s32.totalorder %s60, %s74
    %p76 = scmp.eq.s32.totalorder %s15, 0
    %p77 = por %p75, %p76
    %s79 = sadd.s32 %s78, 1
    %p82 = scmp.eq.s32.totalorder %s9, 1
    %p83 = scmp.ne.s32.totalorder %s78, %s80
    %p84 = scmp.eq.s32.totalorder %s9, 0
    %p85 = por %p83, %p84
    %p86 = scmp.ne.s32.totalorder %s78, %s80
    %p87 = scmp.eq.s32.totalorder %s14, 1
    %p88 = por %p86, %p87
    %p89 = scmp.ne.s32.totalorder %s80, %s81
    %p90 = scmp.eq.s32.totalorder %s14, 0
    %p91 = por %p89, %p90
    %p92 = scmp.ne.s32.totalorder %s80, %s81
    %p93 = scmp.eq.s32.totalorder %s15, 1
    %p94 = por %p92, %p93
    %p96 = scmp.ne.s32.totalorder %s81, %s95
    %p97 = scmp.eq.s32.totalorder %s15, 0
    %p98 = por %p96, %p97
    %s99 = ssub.s32 %s16, %s28
    %s100 = ssub.s32 %s17, %s24
    %s101 = sor.u32 %s99, %s100
    %p102 = scmp.eq.s32.totalorder %s101, 0
    %s104 = sadd.s32 %s103, 1
    %s105 = scalar_select %p102, %s103, %s104
    %p108 = pneg %p102
    %p109 = scmp.eq.s32.totalorder %s9, 1
    %p110 = por %p108, %p109
    %p111 = scmp.ne.s32.totalorder %s103, %s106
    %p112 = scmp.eq.s32.totalorder %s9, 0
    %p113 = por %p111, %p112
    %p114 = scmp.ne.s32.totalorder %s103, %s106
    %p115 = scmp.eq.s32.totalorder %s14, 1
    %p116 = por %p114, %p115
    %p117 = scmp.ne.s32.totalorder %s106, %s107
    %p118 = scmp.eq.s32.totalorder %s14, 0
    %p119 = por %p117, %p118
    %p120 = scmp.ne.s32.totalorder %s106, %s107
    %p121 = scmp.eq.s32.totalorder %s15, 1
    %p122 = por %p120, %p121
    %p124 = scmp.ne.s32.totalorder %s107, %s123
    %p125 = scmp.eq.s32.totalorder %s15, 0
    %p126 = por %p124, %p125
    %p127 = scmp.le.s32.totalorder 1, %s9
    %p128 = scmp.lt.s32.totalorder %s9, 3
    %p129 = pnand %p127, %p128
    %p130 = pneg %p129
    // Predicated region
    $region9: #{fwd_f32.3} parent=5 // pred_check
      _
    $region10: #{fwd_f32.3} parent=5 // pred_check_branch
      %132 = sbr.rel (%p129) target = $region12
    $region11: #{fwd_f32.3} parent=5 // pred_region
      %s133 = ssub.s32 %s9, 1
      // Predicated region
      $region13: #{fwd_f32.3} parent=11 // pred_check
        %p134 = pneg %p70
      $region14: #{fwd_f32.3} parent=11 // pred_check_branch
        %136 = sbr.rel (%p134) target = $region16
      $region15: #{fwd_f32.3} parent=11 // pred_region
        _
      $region16: #{fwd_f32.3} parent=11 // pred_fallthru
        _
      // Predicated region
      $region17: #{fwd_f32.3} parent=11 // pred_check
        %p137 = pneg %p91
      $region18: #{fwd_f32.3} parent=11 // pred_check_branch
        %139 = sbr.rel (%p137) target = $region20
      $region19: #{fwd_f32.3} parent=11 // pred_region
        _
      $region20: #{fwd_f32.3} parent=11 // pred_fallthru
        _
    $region12: #{fwd_f32.3} parent=5 // pred_fallthru
      _
    %p140 = scmp.lt.s32.totalorder %s9, 2
    // Predicated region
    $region21: #{fwd_f32.3} parent=5 // pred_check
      %p141 = pneg %p140
    $region22: #{fwd_f32.3} parent=5 // pred_check_branch
      %143 = sbr.rel (%p141) target = $region24
    $region23: #{fwd_f32.3} parent=5 // pred_region
      // Predicated region
      $region25: #{fwd_f32.3} parent=23 // pred_check
        %p144 = pneg %p43
      $region26: #{fwd_f32.3} parent=23 // pred_check_branch
        %146 = sbr.rel (%p144) target = $region28
      $region27: #{fwd_f32.3} parent=23 // pred_region
        %p147 = scmp.lt.s32.totalorder %s16, 1
        %s148 = scalar_select %p147, %s16, 1
        %p149 = scmp.lt.s32.totalorder %s17, 0
        %s150 = scalar_select %p149, %s17, 0
        %s151 = sadd.s32 %s150, %s148
        %s152 = smul.addr %s151, 8
        %s153 = scalar_lea.vmem %s0, %s152
      $region28: #{fwd_f32.3} parent=23 // pred_fallthru
        _
    $region24: #{fwd_f32.3} parent=5 // pred_fallthru
      _
    %p154 = scmp.le.s32.totalorder 1, %s9
    %p155 = scmp.lt.s32.totalorder %s9, 3
    %p156 = pnand %p154, %p155
    %p157 = pneg %p156
    // Predicated region
    $region29: #{fwd_f32.3} parent=5 // pred_check
      _
    $region30: #{fwd_f32.3} parent=5 // pred_check_branch
      %159 = sbr.rel (%p156) target = $region32
    $region31: #{fwd_f32.3} parent=5 // pred_region
      %s160 = ssub.s32 %s9, 1
      %p161 = scmp.lt.s32.totalorder %s18, 1
      %s162 = scalar_select %p161, %s18, 1
      %p163 = scmp.lt.s32.totalorder %s19, 0
      %s164 = scalar_select %p163, %s19, 0
      %s165 = sadd.s32 %s164, %s162
      %s166 = smul.addr %s165, 8
      %s167 = scalar_lea.vmem %s0, %s166
      %p168 = pneg %p49
      %p169 = pneg %p46
      %p170 = pneg %p70
      %p171 = pneg %p67
      %p172 = pneg %p91
      %p173 = pneg %p88
      %p174 = pneg %p119
      %p175 = pneg %p116
      %p176 = scmp.lt.s32.totalorder %s18, 1
      %s177 = scalar_select %p176, %s18, 1
      %p178 = scmp.lt.s32.totalorder %s19, 0
      %s179 = scalar_select %p178, %s19, 0
      %s180 = sadd.s32 %s179, %s177
      %s181 = smul.addr %s180, 8
      %s182 = scalar_lea.vmem %s3, %s181
      %p183 = scmp.lt.s32.totalorder %s18, 1
      %s184 = scalar_select %p183, %s18, 1
      %p185 = scmp.lt.s32.totalorder %s19, 0
      %s186 = scalar_select %p185, %s19, 0
      %s187 = sadd.s32 %s186, %s184
      %s188 = smul.addr %s187, 8
      %s189 = scalar_lea.vmem %s0, %s188
      %p190 = scmp.lt.s32.totalorder %s18, 1
      %s191 = scalar_select %p190, %s18, 1
      %p192 = scmp.lt.s32.totalorder %s19, 0
      %s193 = scalar_select %p192, %s19, 0
      %s194 = sadd.s32 %s193, %s191
      %s195 = smul.addr %s194, 8
      %s196 = scalar_lea.vmem %s3, %s195
      %v197 = vld [vmem:[%s189] sm:$0xff]
      %v198 = vld [vmem:[%s1] sm:$0xff]
      %200 = vset.pattern.permute.xlu0 0
      %201 = vperm.xlu0 %200, %v198
      %v202 = vpop.permute.xlu0 %201
      %v204 = vmul.f32 %v197, %v202
      %v205 = vld [vmem:[%s2] sm:$0xff]
      %207 = vset.pattern.permute.xlu0 0
      %208 = vperm.xlu0 %207, %v205
      %v209 = vpop.permute.xlu0 %208
      %v211 = vadd.f32 %v204, %v209
      %vm212 = vcmask 523264
      %213 = vst.msk [vmem:[%s196] sm:$0xff] %vm212, %v211
      %p214 = scmp.lt.s32.totalorder %s18, 1
      %s215 = scalar_select %p214, %s18, 1
      %p216 = scmp.lt.s32.totalorder %s19, 0
      %s217 = scalar_select %p216, %s19, 0
      %s218 = sadd.s32 %s217, %s215
      %s219 = smul.addr %s218, 8
      %s220 = scalar_lea.vmem %s3, %s219
      // Predicated region
      $region33: #{fwd_f32.3} parent=31 // pred_check
        %p221 = pneg %p116
      $region34: #{fwd_f32.3} parent=31 // pred_check_branch
        %223 = sbr.rel (%p221) target = $region36
      $region35: #{fwd_f32.3} parent=31 // pred_region
        _
      $region36: #{fwd_f32.3} parent=31 // pred_fallthru
        _
    $region32: #{fwd_f32.3} parent=5 // pred_fallthru
      _
    %p224 = scmp.le.s32.totalorder 2, %s9
    // Predicated region
    $region37: #{fwd_f32.3} parent=5 // pred_check
      %p225 = pneg %p224
    $region38: #{fwd_f32.3} parent=5 // pred_check_branch
      %227 = sbr.rel (%p225) target = $region40
    $region39: #{fwd_f32.3} parent=5 // pred_region
      %s228 = ssub.s32 %s9, 2
      // Predicated region
      $region41: #{fwd_f32.3} parent=39 // pred_check
        %p229 = pneg %p122
      $region42: #{fwd_f32.3} parent=39 // pred_check_branch
        %231 = sbr.rel (%p229) target = $region44
      $region43: #{fwd_f32.3} parent=39 // pred_region
        %p232 = scmp.lt.s32.totalorder %s20, 1
        %s233 = scalar_select %p232, %s20, 1
        %p234 = scmp.lt.s32.totalorder %s21, 0
        %s235 = scalar_select %p234, %s21, 0
        %s236 = sadd.s32 %s235, %s233
        %s237 = smul.addr %s236, 8
        %s238 = scalar_lea.vmem %s3, %s237
      $region44: #{fwd_f32.3} parent=39 // pred_fallthru
        _
    $region40: #{fwd_f32.3} parent=5 // pred_fallthru
      _
  $region6: #{fwd_f32.3} parent=0 // loop_footer
    %s13 = sadd.s32 1, %s9
  $region7: #{fwd_f32.3} parent=0 // loop_footer_branch
    %8 = sbr.rel target = $region3
  $region8: #{fwd_f32.3} parent=0 // loop_exit
    _

</llo_original>
